<compile_context>
chip_gen: v7x
topology: tpu7x:2x2x1
jax: 0.10.0
libtpu: 0.0.40
codegen_flags: <defaults>
</compile_context>

<pallas_src>
import numpy as np
import jax
import jax.numpy as jnp
from jax.experimental import pallas as pl
from jax.experimental.pallas import tpu as pltpu


# ----------------------------------------------------------------------------
# Deterministic parameter setup (mirrors the PyTorch __init__ exactly)
# ----------------------------------------------------------------------------
def _generate_sketch_matrix(rand_h, rand_s, output_dim):
    input_dim = len(rand_h)
    m = np.zeros((input_dim, output_dim), dtype=np.float32)
    m[np.arange(input_dim), rand_h] = rand_s.astype(np.float32)
    return m


def make_sketch_matrices(input_dim1, input_dim2, output_dim):
    np.random.seed(1)
    rand_h_1 = np.random.randint(output_dim, size=input_dim1)
    np.random.seed(3)
    rand_s_1 = 2 * np.random.randint(2, size=input_dim1) - 1
    w1 = _generate_sketch_matrix(rand_h_1, rand_s_1, output_dim)

    np.random.seed(5)
    rand_h_2 = np.random.randint(output_dim, size=input_dim2)
    np.random.seed(7)
    rand_s_2 = 2 * np.random.randint(2, size=input_dim2) - 1
    w2 = _generate_sketch_matrix(rand_h_2, rand_s_2, output_dim)
    return w1, w2


# ----------------------------------------------------------------------------
# Pallas kernel: Bn batch elements per grid step
# ----------------------------------------------------------------------------
def _cbp_kernel(x_ref, y_ref, w1c_ref, w1s_ref, w2c_ref, w2s_ref,
                seg_ref, icos_ref, isin_ref, o_ref):
    x = x_ref[...]                                   # (Bn*HW, C1)
    y = y_ref[...]                                   # (Bn*HW, C2)

    # Folded count-sketch + forward DFT (negation of the imaginary part is
    # already folded into w1s/w2s):  (Bn*HW, C) @ (C, D) -> (Bn*HW, D)
    f1r = jnp.dot(x, w1c_ref[...], preferred_element_type=jnp.float32)
    f1i = jnp.dot(x, w1s_ref[...], preferred_element_type=jnp.float32)
    f2r = jnp.dot(y, w2c_ref[...], preferred_element_type=jnp.float32)
    f2i = jnp.dot(y, w2s_ref[...], preferred_element_type=jnp.float32)

    # Per-row complex product in the frequency domain (same algebra as the
    # PyTorch module).
    fr = f1r * f2r - f1i * f2i                       # (Bn*HW, D)
    fi = f2r * f1i + f1r * f2i                       # (Bn*HW, D)

    # sum_pool over the HW rows of each batch element, hoisted ahead of the
    # inverse DFT (the IDFT is linear).  seg is a 0/1 (Bn, Bn*HW) segment
    # matrix -> MXU row reduction.
    seg = seg_ref[...]
    fr_s = jnp.dot(seg, fr, preferred_element_type=jnp.float32)   # (Bn, D)
    fi_s = jnp.dot(seg, fi, preferred_element_type=jnp.float32)   # (Bn, D)

    # Inverse DFT (real part).  1/D scale and the minus sign are folded into
    # icos/isin on the host.
    o_ref[...] = (jnp.dot(fr_s, icos_ref[...], preferred_element_type=jnp.float32)
                  + jnp.dot(fi_s, isin_ref[...], preferred_element_type=jnp.float32))


def _pick_group(n):
    """Batch elements per grid step.

    Prefer a sublane-aligned (multiple of 8) divisor of N so the (Bn, D)
    output block is well-formed; otherwise process the whole batch at once
    (block == full dim is always legal).
    """
    for g in (64, 32, 16, 8):
        if n % g == 0:
            return g
    return n


# ----------------------------------------------------------------------------
# Wrapper
# ----------------------------------------------------------------------------
def compact_bilinear_pooling(x, y, w1, w2, output_dim, sum_pool=True):
    if not sum_pool:
        # TODO(synk): sum_pool=False path ([N, D, H, W] output) not emitted here.
        raise NotImplementedError("only sum_pool=True is implemented")

    N, C1, H, W = x.shape
    _, C2, _, _ = y.shape
    D = output_dim
    HW = H * W

    # NCHW -> rows in (n, h, w) order, channels on the lane dim.
    x_flat = jnp.transpose(x, (0, 2, 3, 1)).reshape(N * HW, C1).astype(jnp.float32)
    y_flat = jnp.transpose(y, (0, 2, 3, 1)).reshape(N * HW, C2).astype(jnp.float32)

    # ---- Host-side constant folding (done once, in float64 for accuracy) ----
    k = np.arange(D)
    theta = 2.0 * np.pi * np.outer(k, k) / D
    cos_m = np.cos(theta)
    sin_m = np.sin(theta)

    w1_64 = np.asarray(w1, dtype=np.float64)
    w2_64 = np.asarray(w2, dtype=np.float64)
    # Forward DFT folded into the sketch matrices (imag-part negation folded).
    w1c = jnp.asarray((w1_64 @ cos_m).astype(np.float32))          # (C1, D)
    w1s = jnp.asarray((-(w1_64 @ sin_m)).astype(np.float32))       # (C1, D)
    w2c = jnp.asarray((w2_64 @ cos_m).astype(np.float32))          # (C2, D)
    w2s = jnp.asarray((-(w2_64 @ sin_m)).astype(np.float32))       # (C2, D)
    # Inverse DFT matrices with the 1/D scale and minus sign folded in.
    icos = jnp.asarray((cos_m / D).astype(np.float32))             # (D, D)
    isin = jnp.asarray((-sin_m / D).astype(np.float32))            # (D, D)

    # Batch grouping: Bn batch elements per grid step.
    Bn = _pick_group(N)
    G = N // Bn

    # Segment matrix: sums the HW rows belonging to each of the Bn elements.
    seg_np = np.zeros((Bn, Bn * HW), dtype=np.float32)
    for b in range(Bn):
        seg_np[b, b * HW:(b + 1) * HW] = 1.0
    seg = jnp.asarray(seg_np)

    out = pl.pallas_call(
        _cbp_kernel,
        out_shape=jax.ShapeDtypeStruct((N, D), jnp.float32),
        grid_spec=pltpu.PrefetchScalarGridSpec(
            num_scalar_prefetch=0,
            grid=(G,),
            in_specs=[
                pl.BlockSpec((Bn * HW, C1), lambda g: (g, 0)),    # x rows of group g
                pl.BlockSpec((Bn * HW, C2), lambda g: (g, 0)),    # y rows of group g
                pl.BlockSpec((C1, D), lambda g: (0, 0)),          # w1 @ cos
                pl.BlockSpec((C1, D), lambda g: (0, 0)),          # -(w1 @ sin)
                pl.BlockSpec((C2, D), lambda g: (0, 0)),          # w2 @ cos
                pl.BlockSpec((C2, D), lambda g: (0, 0)),          # -(w2 @ sin)
                pl.BlockSpec((Bn, Bn * HW), lambda g: (0, 0)),    # segment-sum matrix
                pl.BlockSpec((D, D), lambda g: (0, 0)),           # IDFT cos / D
                pl.BlockSpec((D, D), lambda g: (0, 0)),           # -IDFT sin / D
            ],
            out_specs=pl.BlockSpec((Bn, D), lambda g: (g, 0)),    # lane-dense 2-D output
        ),
        compiler_params=pltpu.CompilerParams(
            dimension_semantics=("parallel",)),
    )(x_flat, y_flat, w1c, w1s, w2c, w2s, seg, icos, isin)

    return out


# ----------------------------------------------------------------------------
# Pure-JAX reference (uses jnp.fft) for a correctness check
# ----------------------------------------------------------------------------
def reference(x, y, w1, w2, D):
    N, C1, H, W = x.shape
    C2 = y.shape[1]
    x_flat = jnp.transpose(x, (0, 2, 3, 1)).reshape(-1, C1)
    y_flat = jnp.transpose(y, (0, 2, 3, 1)).reshape(-1, C2)
    sk1 = x_flat @ w1
    sk2 = y_flat @ w2
    f1 = jnp.fft.fft(sk1, axis=-1)
    f2 = jnp.fft.fft(sk2, axis=-1)
    cbp = jnp.real(jnp.fft.ifft(f1 * f2, axis=-1))
    cbp = cbp.reshape(N, H, W, D).transpose(0, 3, 1, 2)
    return cbp.sum(axis=(2, 3))


if __name__ == "__main__":
    N, C1, C2, H, W, D = 2, 4, 6, 8, 8, 32

    key = jax.random.PRNGKey(0)
    k1, k2 = jax.random.split(key)
    x = jax.random.normal(k1, (N, C1, H, W), dtype=jnp.float32)
    y = jax.random.normal(k2, (N, C2, H, W), dtype=jnp.float32)

    w1, w2 = make_sketch_matrices(C1, C2, D)

    out = compact_bilinear_pooling(x, y, w1, w2, D, sum_pool=True)
    out = jax.block_until_ready(out)

    ref = reference(x, y, jnp.asarray(w1), jnp.asarray(w2), D)
    assert out.shape == (N, D)
    np.testing.assert_allclose(np.asarray(out), np.asarray(ref),
                               rtol=1e-3, atol=1e-3)
    print("KERNEL_OK")
</pallas_src>

<mosaic_0001>
module attributes {stable_mosaic.version = 11 : i64} {
  func.func @_cbp_kernel(%arg0: i32, %arg1: memref<128x4xf32, #tpu.memory_space<vmem>>, %arg2: memref<128x6xf32, #tpu.memory_space<vmem>>, %arg3: memref<4x32xf32, #tpu.memory_space<vmem>>, %arg4: memref<4x32xf32, #tpu.memory_space<vmem>>, %arg5: memref<6x32xf32, #tpu.memory_space<vmem>>, %arg6: memref<6x32xf32, #tpu.memory_space<vmem>>, %arg7: memref<2x128xf32, #tpu.memory_space<vmem>>, %arg8: memref<32x32xf32, #tpu.memory_space<vmem>>, %arg9: memref<32x32xf32, #tpu.memory_space<vmem>>, %arg10: memref<2x32xf32, #tpu.memory_space<vmem>>) attributes {dimension_semantics = [#tpu.dimension_semantics<parallel>], iteration_bounds = array<i64: 1>, scalar_prefetch = 0 : i64, scratch_operands = 0 : i64, tpu.core_type = #tpu.core_type<tc>, window_params = [{transform_indices = @transform_0, window_bounds = array<i64: 128, 4>}, {transform_indices = @transform_1, window_bounds = array<i64: 128, 6>}, {pipeline_mode = #tpu.pipeline_mode<synchronous>, transform_indices = @transform_2, window_bounds = array<i64: 4, 32>}, {pipeline_mode = #tpu.pipeline_mode<synchronous>, transform_indices = @transform_3, window_bounds = array<i64: 4, 32>}, {pipeline_mode = #tpu.pipeline_mode<synchronous>, transform_indices = @transform_4, window_bounds = array<i64: 6, 32>}, {pipeline_mode = #tpu.pipeline_mode<synchronous>, transform_indices = @transform_5, window_bounds = array<i64: 6, 32>}, {pipeline_mode = #tpu.pipeline_mode<synchronous>, transform_indices = @transform_6, window_bounds = array<i64: 2, 128>}, {pipeline_mode = #tpu.pipeline_mode<synchronous>, transform_indices = @transform_7, window_bounds = array<i64: 32, 32>}, {pipeline_mode = #tpu.pipeline_mode<synchronous>, transform_indices = @transform_8, window_bounds = array<i64: 32, 32>}, {transform_indices = @transform_9, window_bounds = array<i64: 2, 32>}]} {
    %c0 = arith.constant 0 : index
    %c0_0 = arith.constant 0 : index
    %0 = vector.load %arg1[%c0, %c0_0] : memref<128x4xf32, #tpu.memory_space<vmem>>, vector<128x4xf32>
    %c0_1 = arith.constant 0 : index
    %c0_2 = arith.constant 0 : index
    %1 = vector.load %arg2[%c0_1, %c0_2] : memref<128x6xf32, #tpu.memory_space<vmem>>, vector<128x6xf32>
    %c0_3 = arith.constant 0 : index
    %c0_4 = arith.constant 0 : index
    %2 = vector.load %arg3[%c0_3, %c0_4] : memref<4x32xf32, #tpu.memory_space<vmem>>, vector<4x32xf32>
    %cst = arith.constant dense<0.000000e+00> : vector<128x32xf32>
    %3 = tpu.matmul %0, %2, %cst {dimension_numbers = #tpu.dot_dimension_numbers<[1], [0], [0], [1], [0, 0, 1, 1], [], []>} : vector<128x4xf32>, vector<4x32xf32>, vector<128x32xf32> -> vector<128x32xf32>
    %c0_5 = arith.constant 0 : index
    %c0_6 = arith.constant 0 : index
    %4 = vector.load %arg4[%c0_5, %c0_6] : memref<4x32xf32, #tpu.memory_space<vmem>>, vector<4x32xf32>
    %cst_7 = arith.constant dense<0.000000e+00> : vector<128x32xf32>
    %5 = tpu.matmul %0, %4, %cst_7 {dimension_numbers = #tpu.dot_dimension_numbers<[1], [0], [0], [1], [0, 0, 1, 1], [], []>} : vector<128x4xf32>, vector<4x32xf32>, vector<128x32xf32> -> vector<128x32xf32>
    %c0_8 = arith.constant 0 : index
    %c0_9 = arith.constant 0 : index
    %6 = vector.load %arg5[%c0_8, %c0_9] : memref<6x32xf32, #tpu.memory_space<vmem>>, vector<6x32xf32>
    %cst_10 = arith.constant dense<0.000000e+00> : vector<128x32xf32>
    %7 = tpu.matmul %1, %6, %cst_10 {dimension_numbers = #tpu.dot_dimension_numbers<[1], [0], [0], [1], [0, 0, 1, 1], [], []>} : vector<128x6xf32>, vector<6x32xf32>, vector<128x32xf32> -> vector<128x32xf32>
    %c0_11 = arith.constant 0 : index
    %c0_12 = arith.constant 0 : index
    %8 = vector.load %arg6[%c0_11, %c0_12] : memref<6x32xf32, #tpu.memory_space<vmem>>, vector<6x32xf32>
    %cst_13 = arith.constant dense<0.000000e+00> : vector<128x32xf32>
    %9 = tpu.matmul %1, %8, %cst_13 {dimension_numbers = #tpu.dot_dimension_numbers<[1], [0], [0], [1], [0, 0, 1, 1], [], []>} : vector<128x6xf32>, vector<6x32xf32>, vector<128x32xf32> -> vector<128x32xf32>
    %10 = arith.mulf %3, %7 : vector<128x32xf32>
    %11 = arith.mulf %5, %9 : vector<128x32xf32>
    %12 = arith.subf %10, %11 : vector<128x32xf32>
    %13 = arith.mulf %7, %5 : vector<128x32xf32>
    %14 = arith.mulf %3, %9 : vector<128x32xf32>
    %15 = arith.addf %13, %14 : vector<128x32xf32>
    %c0_14 = arith.constant 0 : index
    %c0_15 = arith.constant 0 : index
    %16 = vector.load %arg7[%c0_14, %c0_15] : memref<2x128xf32, #tpu.memory_space<vmem>>, vector<2x128xf32>
    %cst_16 = arith.constant dense<0.000000e+00> : vector<2x32xf32>
    %17 = tpu.matmul %16, %12, %cst_16 {dimension_numbers = #tpu.dot_dimension_numbers<[1], [0], [0], [1], [0, 0, 1, 1], [], []>} : vector<2x128xf32>, vector<128x32xf32>, vector<2x32xf32> -> vector<2x32xf32>
    %cst_17 = arith.constant dense<0.000000e+00> : vector<2x32xf32>
    %18 = tpu.matmul %16, %15, %cst_17 {dimension_numbers = #tpu.dot_dimension_numbers<[1], [0], [0], [1], [0, 0, 1, 1], [], []>} : vector<2x128xf32>, vector<128x32xf32>, vector<2x32xf32> -> vector<2x32xf32>
    %c0_18 = arith.constant 0 : index
    %c0_19 = arith.constant 0 : index
    %19 = vector.load %arg8[%c0_18, %c0_19] : memref<32x32xf32, #tpu.memory_space<vmem>>, vector<32x32xf32>
    %cst_20 = arith.constant dense<0.000000e+00> : vector<2x32xf32>
    %20 = tpu.matmul %17, %19, %cst_20 {dimension_numbers = #tpu.dot_dimension_numbers<[1], [0], [0], [1], [0, 0, 1, 1], [], []>} : vector<2x32xf32>, vector<32x32xf32>, vector<2x32xf32> -> vector<2x32xf32>
    %c0_21 = arith.constant 0 : index
    %c0_22 = arith.constant 0 : index
    %21 = vector.load %arg9[%c0_21, %c0_22] : memref<32x32xf32, #tpu.memory_space<vmem>>, vector<32x32xf32>
    %cst_23 = arith.constant dense<0.000000e+00> : vector<2x32xf32>
    %22 = tpu.matmul %18, %21, %cst_23 {dimension_numbers = #tpu.dot_dimension_numbers<[1], [0], [0], [1], [0, 0, 1, 1], [], []>} : vector<2x32xf32>, vector<32x32xf32>, vector<2x32xf32> -> vector<2x32xf32>
    %23 = arith.addf %20, %22 : vector<2x32xf32>
    %c0_24 = arith.constant 0 : index
    %c0_25 = arith.constant 0 : index
    %24 = vector.load %arg10[%c0_24, %c0_25] : memref<2x32xf32, #tpu.memory_space<vmem>>, vector<2x32xf32>
    tpu.vector_store %arg10[%c0_24, %c0_25], %23 {strides = array<i32>} : memref<2x32xf32, #tpu.memory_space<vmem>>, vector<2x32xf32>,
    return
  }
  func.func @transform_0(%arg0: i32) -> (i32, i32) {
    %c0_i32 = arith.constant 0 : i32
    %c0_i32_0 = arith.constant 0 : i32
    return %arg0, %c0_i32 : i32, i32
  }
  func.func @transform_1(%arg0: i32) -> (i32, i32) {
    %c0_i32 = arith.constant 0 : i32
    %c0_i32_0 = arith.constant 0 : i32
    return %arg0, %c0_i32 : i32, i32
  }
  func.func @transform_2(%arg0: i32) -> (i32, i32) {
    %c0_i32 = arith.constant 0 : i32
    %c0_i32_0 = arith.constant 0 : i32
    %c0_i32_1 = arith.constant 0 : i32
    return %c0_i32, %c0_i32_0 : i32, i32
  }
  func.func @transform_3(%arg0: i32) -> (i32, i32) {
    %c0_i32 = arith.constant 0 : i32
    %c0_i32_0 = arith.constant 0 : i32
    %c0_i32_1 = arith.constant 0 : i32
    return %c0_i32, %c0_i32_0 : i32, i32
  }
  func.func @transform_4(%arg0: i32) -> (i32, i32) {
    %c0_i32 = arith.constant 0 : i32
    %c0_i32_0 = arith.constant 0 : i32
    %c0_i32_1 = arith.constant 0 : i32
    return %c0_i32, %c0_i32_0 : i32, i32
  }
  func.func @transform_5(%arg0: i32) -> (i32, i32) {
    %c0_i32 = arith.constant 0 : i32
    %c0_i32_0 = arith.constant 0 : i32
    %c0_i32_1 = arith.constant 0 : i32
    return %c0_i32, %c0_i32_0 : i32, i32
  }
  func.func @transform_6(%arg0: i32) -> (i32, i32) {
    %c0_i32 = arith.constant 0 : i32
    %c0_i32_0 = arith.constant 0 : i32
    %c0_i32_1 = arith.constant 0 : i32
    return %c0_i32, %c0_i32_0 : i32, i32
  }
  func.func @transform_7(%arg0: i32) -> (i32, i32) {
    %c0_i32 = arith.constant 0 : i32
    %c0_i32_0 = arith.constant 0 : i32
    %c0_i32_1 = arith.constant 0 : i32
    return %c0_i32, %c0_i32_0 : i32, i32
  }
  func.func @transform_8(%arg0: i32) -> (i32, i32) {
    %c0_i32 = arith.constant 0 : i32
    %c0_i32_0 = arith.constant 0 : i32
    %c0_i32_1 = arith.constant 0 : i32
    return %c0_i32, %c0_i32_0 : i32, i32
  }
  func.func @transform_9(%arg0: i32) -> (i32, i32) {
    %c0_i32 = arith.constant 0 : i32
    %c0_i32_0 = arith.constant 0 : i32
    return %arg0, %c0_i32 : i32, i32
  }
}

</mosaic_0001>

<llo_original>
// kernel: tpu_custom_call.1
$region0: #{tpu_custom_call.1}
  #allocation0 [shape = 'u32[]', space=smem, size = 0x4, offset = 0x4, fixed_abs, tag = 'smem constant byte address 0x4 - core index']
  #allocation1 [shape = 'u32[144,128]{1,0:T(1,128)}', space=vmem, size = 0x12000, scoped, tag = 'internal scratch']
  %s0 = inlined_call_operand.vmem [shape: f32[128,4], index: 0, kind: input, shape index: {}]
  %s1 = inlined_call_operand.vmem [shape: f32[128,6], index: 1, kind: input, shape index: {}]
  %s2 = inlined_call_operand.vmem [shape: f32[4,32], index: 2, kind: input, shape index: {}]
  %s3 = inlined_call_operand.vmem [shape: f32[4,32], index: 3, kind: input, shape index: {}]
  %s4 = inlined_call_operand.vmem [shape: f32[6,32], index: 4, kind: input, shape index: {}]
  %s5 = inlined_call_operand.vmem [shape: f32[6,32], index: 5, kind: input, shape index: {}]
  %s6 = inlined_call_operand.vmem [shape: f32[2,128], index: 6, kind: input, shape index: {}]
  %s7 = inlined_call_operand.vmem [shape: f32[32,32], index: 7, kind: input, shape index: {}]
  %s8 = inlined_call_operand.vmem [shape: f32[32,32], index: 8, kind: input, shape index: {}]
  %s9 = inlined_call_operand.hbm [shape: f32[2,32], index: 9, kind: output, shape index: {}]
  %s10 = sld [smem:[#allocation0]]
  $region46: #{tpu_custom_call.1} parent=0
    _
  %s12 = ssub.s32 1, %s10
  %s13 = scalar_select 0, %s12, %s10
  $region1: #{tpu_custom_call.1} parent=0
    #allocation2 [shape = 'u8[1024]{0}', space=vmem, size = 0x400, scoped, tag = 'output window, operand 0, single buffered']
    #allocation3 [shape = 's32[1]{0}', space=sflag, size = 0x4, scoped, tag = 'scoped memory for tpu_custom_call.1']
    %14 = vsyncpa [#allocation3], 0
    // Predicated region
    $region2: #{tpu_custom_call.1} parent=1 // pred_check
      _
    $region3: #{tpu_custom_call.1} parent=1 // pred_check_branch
      %16 = sbr.rel (0) target = $region5
    $region4: #{tpu_custom_call.1} parent=1 // pred_region
      _
    $region5: #{tpu_custom_call.1} parent=1 // pred_fallthru
      _
    // Predicated region
    $region6: #{tpu_custom_call.1} parent=1 // pred_check
      _
    $region7: #{tpu_custom_call.1} parent=1 // pred_check_branch
      %18 = sbr.rel (0) target = $region9
    $region8: #{tpu_custom_call.1} parent=1 // pred_region
      _
    $region9: #{tpu_custom_call.1} parent=1 // pred_fallthru
      _
    // Predicated region
    $region10: #{tpu_custom_call.1} parent=1 // pred_check
      _
    $region11: #{tpu_custom_call.1} parent=1 // pred_check_branch
      %20 = sbr.rel (0) target = $region13
    $region12: #{tpu_custom_call.1} parent=1 // pred_region
      _
    $region13: #{tpu_custom_call.1} parent=1 // pred_fallthru
      _
    // Predicated region
    $region14: #{tpu_custom_call.1} parent=1 // pred_check
      _
    $region15: #{tpu_custom_call.1} parent=1 // pred_check_branch
      %22 = sbr.rel (0) target = $region17
    $region16: #{tpu_custom_call.1} parent=1 // pred_region
      _
    $region17: #{tpu_custom_call.1} parent=1 // pred_fallthru
      _
    // Predicated region
    $region18: #{tpu_custom_call.1} parent=1 // pred_check
      _
    $region19: #{tpu_custom_call.1} parent=1 // pred_check_branch
      %24 = sbr.rel (0) target = $region21
    $region20: #{tpu_custom_call.1} parent=1 // pred_region
      _
    $region21: #{tpu_custom_call.1} parent=1 // pred_fallthru
      _
    // Predicated region
    $region22: #{tpu_custom_call.1} parent=1 // pred_check
      _
    $region23: #{tpu_custom_call.1} parent=1 // pred_check_branch
      %26 = sbr.rel (0) target = $region25
    $region24: #{tpu_custom_call.1} parent=1 // pred_region
      _
    $region25: #{tpu_custom_call.1} parent=1 // pred_fallthru
      _
    // Predicated region
    $region26: #{tpu_custom_call.1} parent=1 // pred_check
      _
    $region27: #{tpu_custom_call.1} parent=1 // pred_check_branch
      %28 = sbr.rel (0) target = $region29
    $region28: #{tpu_custom_call.1} parent=1 // pred_region
      _
    $region29: #{tpu_custom_call.1} parent=1 // pred_fallthru
      _
    // Predicated region
    $region30: #{tpu_custom_call.1} parent=1 // pred_check
      _
    $region31: #{tpu_custom_call.1} parent=1 // pred_check_branch
      %30 = sbr.rel (0) target = $region33
    $region32: #{tpu_custom_call.1} parent=1 // pred_region
      _
    $region33: #{tpu_custom_call.1} parent=1 // pred_fallthru
      _
    // Predicated region
    $region34: #{tpu_custom_call.1} parent=1 // pred_check
      _
    $region35: #{tpu_custom_call.1} parent=1 // pred_check_branch
      %32 = sbr.rel (0) target = $region37
    $region36: #{tpu_custom_call.1} parent=1 // pred_region
      _
    $region37: #{tpu_custom_call.1} parent=1 // pred_fallthru
      _
    %v33 = vld [vmem:[%s0] sm:$0xff]
    %v34 = vld [vmem:[%s0 + $0x8] sm:$0xff]
    %v35 = vld [vmem:[%s0 + $0x10] sm:$0xff]
    %v36 = vld [vmem:[%s0 + $0x18] sm:$0xff]
    %v37 = vld [vmem:[%s0 + $0x20] sm:$0xff]
    %v38 = vld [vmem:[%s0 + $0x28] sm:$0xff]
    %v39 = vld [vmem:[%s0 + $0x30] sm:$0xff]
    %v40 = vld [vmem:[%s0 + $0x38] sm:$0xff]
    %v41 = vld [vmem:[%s0 + $0x40] sm:$0xff]
    %v42 = vld [vmem:[%s0 + $0x48] sm:$0xff]
    %v43 = vld [vmem:[%s0 + $0x50] sm:$0xff]
    %v44 = vld [vmem:[%s0 + $0x58] sm:$0xff]
    %v45 = vld [vmem:[%s0 + $0x60] sm:$0xff]
    %v46 = vld [vmem:[%s0 + $0x68] sm:$0xff]
    %v47 = vld [vmem:[%s0 + $0x70] sm:$0xff]
    %v48 = vld [vmem:[%s0 + $0x78] sm:$0xff]
    %v49 = vld [vmem:[%s1] sm:$0xff]
    %v50 = vld [vmem:[%s1 + $0x8] sm:$0xff]
    %v51 = vld [vmem:[%s1 + $0x10] sm:$0xff]
    %v52 = vld [vmem:[%s1 + $0x18] sm:$0xff]
    %v53 = vld [vmem:[%s1 + $0x20] sm:$0xff]
    %v54 = vld [vmem:[%s1 + $0x28] sm:$0xff]
    %v55 = vld [vmem:[%s1 + $0x30] sm:$0xff]
    %v56 = vld [vmem:[%s1 + $0x38] sm:$0xff]
    %v57 = vld [vmem:[%s1 + $0x40] sm:$0xff]
    %v58 = vld [vmem:[%s1 + $0x48] sm:$0xff]
    %v59 = vld [vmem:[%s1 + $0x50] sm:$0xff]
    %v60 = vld [vmem:[%s1 + $0x58] sm:$0xff]
    %v61 = vld [vmem:[%s1 + $0x60] sm:$0xff]
    %v62 = vld [vmem:[%s1 + $0x68] sm:$0xff]
    %v63 = vld [vmem:[%s1 + $0x70] sm:$0xff]
    %v64 = vld [vmem:[%s1 + $0x78] sm:$0xff]
    %v65 = vld [vmem:[%s2] sm:$0xf]
    %vm66 = vcmask 31744
    %v68 = vsel %vm66, %v33, 0
    %v71 = vsel %vm66, %v34, 0
    %v74 = vsel %vm66, %v35, 0
    %v77 = vsel %vm66, %v36, 0
    %v80 = vsel %vm66, %v37, 0
    %v83 = vsel %vm66, %v38, 0
    %v86 = vsel %vm66, %v39, 0
    %v89 = vsel %vm66, %v40, 0
    %v92 = vsel %vm66, %v41, 0
    %v95 = vsel %vm66, %v42, 0
    %v98 = vsel %vm66, %v43, 0
    %v101 = vsel %vm66, %v44, 0
    %v104 = vsel %vm66, %v45, 0
    %v107 = vsel %vm66, %v46, 0
    %v110 = vsel %vm66, %v47, 0
    %v113 = vsel %vm66, %v48, 0
    %vm115 = vcmask 1043456
    %v117 = vsel %vm115, %v65, 0
    %119 = vmatprep.subr.mxu0 0.0
    %120 = vmatpush1.msra.mxu0 %v117
    %121 = vmatprep.subr.mxu0 0.0
    %122 = vmatpush1.msra.mxu0 0.0
    %123 = vmatprep.subr.mxu0 0.0
    %124 = vmatpush1.msra.mxu0 0.0
    %125 = vmatprep.subr.mxu0 0.0
    %126 = vmatpush1.msra.mxu0 0.0
    %127 = vmatprep.subr.mxu0 0.0
    %128 = vmatpush1.msra.mxu0 0.0
    %129 = vmatprep.subr.mxu0 0.0
    %130 = vmatpush1.msra.mxu0 0.0
    %131 = vmatprep.subr.mxu0 0.0
    %132 = vmatpush1.msra.mxu0 0.0
    %133 = vmatprep.subr.mxu0 0.0
    %134 = vmatpush1.msra.mxu0 0.0
    %135 = vmatprep.subr.mxu0 0.0
    %136 = vmatpush1.msra.mxu0 0.0
    %137 = vmatprep.subr.mxu0 0.0
    %138 = vmatpush1.msra.mxu0 0.0
    %139 = vmatprep.subr.mxu0 0.0
    %140 = vmatpush1.msra.mxu0 0.0
    %141 = vmatprep.subr.mxu0 0.0
    %142 = vmatpush1.msra.mxu0 0.0
    %143 = vmatprep.subr.mxu0 0.0
    %144 = vmatpush1.msra.mxu0 0.0
    %145 = vmatprep.subr.mxu0 0.0
    %146 = vmatpush1.msra.mxu0 0.0
    %147 = vmatprep.subr.mxu0 0.0
    %148 = vmatpush1.msra.mxu0 0.0
    %149 = vmatprep.subr.mxu0 0.0
    %150 = vmatpush1.msra.mxu0 0.0
    %151 = vmatprep.subr.mxu0 0.0
    %152 = vmatpush1.msra.mxu0 0.0
    %153 = vmatprep.subr.mxu0 0.0
    %154 = vmatpush1.msra.mxu0 0.0
    %155 = vmatprep.subr.mxu0 0.0
    %156 = vmatpush1.msra.mxu0 0.0
    %157 = vmatprep.subr.mxu0 0.0
    %158 = vmatpush1.msra.mxu0 0.0
    %159 = vmatprep.subr.mxu0 0.0
    %160 = vmatpush1.msra.mxu0 0.0
    %161 = vmatprep.subr.mxu0 0.0
    %162 = vmatpush1.msra.mxu0 0.0
    %163 = vmatprep.subr.mxu0 0.0
    %164 = vmatpush1.msra.mxu0 0.0
    %165 = vmatprep.subr.mxu0 0.0
    %166 = vmatpush1.msra.mxu0 0.0
    %167 = vmatprep.subr.mxu0 0.0
    %168 = vmatpush1.msra.mxu0 0.0
    %169 = vmatprep.subr.mxu0 0.0
    %170 = vmatpush1.msra.mxu0 0.0
    %171 = vmatprep.subr.mxu0 0.0
    %172 = vmatpush1.msra.mxu0 0.0
    %173 = vmatprep.subr.mxu0 0.0
    %174 = vmatpush1.msra.mxu0 0.0
    %175 = vmatprep.subr.mxu0 0.0
    %176 = vmatpush1.msra.mxu0 0.0
    %177 = vmatprep.subr.mxu0 0.0
    %178 = vmatpush1.msra.mxu0 0.0
    %179 = vmatprep.subr.mxu0 0.0
    %180 = vmatpush1.msra.mxu0 0.0
    %181 = vmatprep.subr.mxu0 0.0
    %182 = vmatpush1.msra.mxu0 0.0
    %183 = vmatprep.mubr.f32.mxu0 0.0
    %184 = vmatmul.mubr.f32.gmra.mrb[0].mxu0 %v68
    %v185 = vpop.f32.mrb[0].mxu0
    %v186 = vadd.f32 0.0, %v185
    %v187 = vpop.f32.mrb[0].mxu0
    %188 = vmatprep.mubr.f32.mxu0 0.0
    %189 = vmatmul.mubr.f32.gmra.mrb[0].mxu0 %v71
    %v190 = vpop.f32.mrb[0].mxu0
    %v191 = vadd.f32 0.0, %v190
    %v192 = vpop.f32.mrb[0].mxu0
    %193 = vmatprep.mubr.f32.mxu0 0.0
    %194 = vmatmul.mubr.f32.gmra.mrb[0].mxu0 %v74
    %v195 = vpop.f32.mrb[0].mxu0
    %v196 = vadd.f32 0.0, %v195
    %v197 = vpop.f32.mrb[0].mxu0
    %198 = vmatprep.mubr.f32.mxu0 0.0
    %199 = vmatmul.mubr.f32.gmra.mrb[0].mxu0 %v77
    %v200 = vpop.f32.mrb[0].mxu0
    %v201 = vadd.f32 0.0, %v200
    %v202 = vpop.f32.mrb[0].mxu0
    %203 = vmatprep.mubr.f32.mxu0 0.0
    %204 = vmatmul.mubr.f32.gmra.mrb[0].mxu0 %v80
    %v205 = vpop.f32.mrb[0].mxu0
    %v206 = vadd.f32 0.0, %v205
    %v207 = vpop.f32.mrb[0].mxu0
    %208 = vmatprep.mubr.f32.mxu0 0.0
    %209 = vmatmul.mubr.f32.gmra.mrb[0].mxu0 %v83
    %v210 = vpop.f32.mrb[0].mxu0
    %v211 = vadd.f32 0.0, %v210
    %v212 = vpop.f32.mrb[0].mxu0
    %213 = vmatprep.mubr.f32.mxu0 0.0
    %214 = vmatmul.mubr.f32.gmra.mrb[0].mxu0 %v86
    %v215 = vpop.f32.mrb[0].mxu0
    %v216 = vadd.f32 0.0, %v215
    %v217 = vpop.f32.mrb[0].mxu0
    %218 = vmatprep.mubr.f32.mxu0 0.0
    %219 = vmatmul.mubr.f32.gmra.mrb[0].mxu0 %v89
    %v220 = vpop.f32.mrb[0].mxu0
    %v221 = vadd.f32 0.0, %v220
    %v222 = vpop.f32.mrb[0].mxu0
    %223 = vmatprep.mubr.f32.mxu0 0.0
    %224 = vmatmul.mubr.f32.gmra.mrb[0].mxu0 %v92
    %v225 = vpop.f32.mrb[0].mxu0
    %v226 = vadd.f32 0.0, %v225
    %v227 = vpop.f32.mrb[0].mxu0
    %228 = vmatprep.mubr.f32.mxu0 0.0
    %229 = vmatmul.mubr.f32.gmra.mrb[0].mxu0 %v95
    %v230 = vpop.f32.mrb[0].mxu0
    %v231 = vadd.f32 0.0, %v230
    %v232 = vpop.f32.mrb[0].mxu0
    %233 = vmatprep.mubr.f32.mxu0 0.0
    %234 = vmatmul.mubr.f32.gmra.mrb[0].mxu0 %v98
    %v235 = vpop.f32.mrb[0].mxu0
    %v236 = vadd.f32 0.0, %v235
    %v237 = vpop.f32.mrb[0].mxu0
    %238 = vmatprep.mubr.f32.mxu0 0.0
    %239 = vmatmul.mubr.f32.gmra.mrb[0].mxu0 %v101
    %v240 = vpop.f32.mrb[0].mxu0
    %v241 = vadd.f32 0.0, %v240
    %v242 = vpop.f32.mrb[0].mxu0
    %243 = vmatprep.mubr.f32.mxu0 0.0
    %244 = vmatmul.mubr.f32.gmra.mrb[0].mxu0 %v104
    %v245 = vpop.f32.mrb[0].mxu0
    %v246 = vadd.f32 0.0, %v245
    %v247 = vpop.f32.mrb[0].mxu0
    %248 = vmatprep.mubr.f32.mxu0 0.0
    %249 = vmatmul.mubr.f32.gmra.mrb[0].mxu0 %v107
    %v250 = vpop.f32.mrb[0].mxu0
    %v251 = vadd.f32 0.0, %v250
    %v252 = vpop.f32.mrb[0].mxu0
    %253 = vmatprep.mubr.f32.mxu0 0.0
    %254 = vmatmul.mubr.f32.gmra.mrb[0].mxu0 %v110
    %v255 = vpop.f32.mrb[0].mxu0
    %v256 = vadd.f32 0.0, %v255
    %v257 = vpop.f32.mrb[0].mxu0
    %258 = vmatprep.mubr.f32.mxu0 0.0
    %259 = vmatmul.mubr.f32.gmra.mrb[0].mxu0 %v113
    %v260 = vpop.f32.mrb[0].mxu0
    %v261 = vadd.f32 0.0, %v260
    %v262 = vpop.f32.mrb[0].mxu0
    %263 = vdwg.mxu0
    %v264 = vld [vmem:[%s3] sm:$0xf]
    %v266 = vsel %vm115, %v264, 0
    %268 = vmatprep.subr.mxu0 0.0
    %269 = vmatpush1.msra.mxu0 %v266
    %270 = vmatprep.subr.mxu0 0.0
    %271 = vmatpush1.msra.mxu0 0.0
    %272 = vmatprep.subr.mxu0 0.0
    %273 = vmatpush1.msra.mxu0 0.0
    %274 = vmatprep.subr.mxu0 0.0
    %275 = vmatpush1.msra.mxu0 0.0
    %276 = vmatprep.subr.mxu0 0.0
    %277 = vmatpush1.msra.mxu0 0.0
    %278 = vmatprep.subr.mxu0 0.0
    %279 = vmatpush1.msra.mxu0 0.0
    %280 = vmatprep.subr.mxu0 0.0
    %281 = vmatpush1.msra.mxu0 0.0
    %282 = vmatprep.subr.mxu0 0.0
    %283 = vmatpush1.msra.mxu0 0.0
    %284 = vmatprep.subr.mxu0 0.0
    %285 = vmatpush1.msra.mxu0 0.0
    %286 = vmatprep.subr.mxu0 0.0
    %287 = vmatpush1.msra.mxu0 0.0
    %288 = vmatprep.subr.mxu0 0.0
    %289 = vmatpush1.msra.mxu0 0.0
    %290 = vmatprep.subr.mxu0 0.0
    %291 = vmatpush1.msra.mxu0 0.0
    %292 = vmatprep.subr.mxu0 0.0
    %293 = vmatpush1.msra.mxu0 0.0
    %294 = vmatprep.subr.mxu0 0.0
    %295 = vmatpush1.msra.mxu0 0.0
    %296 = vmatprep.subr.mxu0 0.0
    %297 = vmatpush1.msra.mxu0 0.0
    %298 = vmatprep.subr.mxu0 0.0
    %299 = vmatpush1.msra.mxu0 0.0
    %300 = vmatprep.subr.mxu0 0.0
    %301 = vmatpush1.msra.mxu0 0.0
    %302 = vmatprep.subr.mxu0 0.0
    %303 = vmatpush1.msra.mxu0 0.0
    %304 = vmatprep.subr.mxu0 0.0
    %305 = vmatpush1.msra.mxu0 0.0
    %306 = vmatprep.subr.mxu0 0.0
    %307 = vmatpush1.msra.mxu0 0.0
    %308 = vmatprep.subr.mxu0 0.0
    %309 = vmatpush1.msra.mxu0 0.0
    %310 = vmatprep.subr.mxu0 0.0
    %311 = vmatpush1.msra.mxu0 0.0
    %312 = vmatprep.subr.mxu0 0.0
    %313 = vmatpush1.msra.mxu0 0.0
    %314 = vmatprep.subr.mxu0 0.0
    %315 = vmatpush1.msra.mxu0 0.0
    %316 = vmatprep.subr.mxu0 0.0
    %317 = vmatpush1.msra.mxu0 0.0
    %318 = vmatprep.subr.mxu0 0.0
    %319 = vmatpush1.msra.mxu0 0.0
    %320 = vmatprep.subr.mxu0 0.0
    %321 = vmatpush1.msra.mxu0 0.0
    %322 = vmatprep.subr.mxu0 0.0
    %323 = vmatpush1.msra.mxu0 0.0
    %324 = vmatprep.subr.mxu0 0.0
    %325 = vmatpush1.msra.mxu0 0.0
    %326 = vmatprep.subr.mxu0 0.0
    %327 = vmatpush1.msra.mxu0 0.0
    %328 = vmatprep.subr.mxu0 0.0
    %329 = vmatpush1.msra.mxu0 0.0
    %330 = vmatprep.subr.mxu0 0.0
    %331 = vmatpush1.msra.mxu0 0.0
    %332 = vmatprep.mubr.f32.mxu0 0.0
    %333 = vmatmul.mubr.f32.gmra.mrb[0].mxu0 %v68
    %v334 = vpop.f32.mrb[0].mxu0
    %v335 = vadd.f32 0.0, %v334
    %v336 = vpop.f32.mrb[0].mxu0
    %337 = vmatprep.mubr.f32.mxu0 0.0
    %338 = vmatmul.mubr.f32.gmra.mrb[0].mxu0 %v71
    %v339 = vpop.f32.mrb[0].mxu0
    %v340 = vadd.f32 0.0, %v339
    %v341 = vpop.f32.mrb[0].mxu0
    %342 = vmatprep.mubr.f32.mxu0 0.0
    %343 = vmatmul.mubr.f32.gmra.mrb[0].mxu0 %v74
    %v344 = vpop.f32.mrb[0].mxu0
    %v345 = vadd.f32 0.0, %v344
    %v346 = vpop.f32.mrb[0].mxu0
    %347 = vmatprep.mubr.f32.mxu0 0.0
    %348 = vmatmul.mubr.f32.gmra.mrb[0].mxu0 %v77
    %v349 = vpop.f32.mrb[0].mxu0
    %v350 = vadd.f32 0.0, %v349
    %v351 = vpop.f32.mrb[0].mxu0
    %352 = vmatprep.mubr.f32.mxu0 0.0
    %353 = vmatmul.mubr.f32.gmra.mrb[0].mxu0 %v80
    %v354 = vpop.f32.mrb[0].mxu0
    %v355 = vadd.f32 0.0, %v354
    %v356 = vpop.f32.mrb[0].mxu0
    %357 = vmatprep.mubr.f32.mxu0 0.0
    %358 = vmatmul.mubr.f32.gmra.mrb[0].mxu0 %v83
    %v359 = vpop.f32.mrb[0].mxu0
    %v360 = vadd.f32 0.0, %v359
    %v361 = vpop.f32.mrb[0].mxu0
    %362 = vmatprep.mubr.f32.mxu0 0.0
    %363 = vmatmul.mubr.f32.gmra.mrb[0].mxu0 %v86
    %v364 = vpop.f32.mrb[0].mxu0
    %v365 = vadd.f32 0.0, %v364
    %v366 = vpop.f32.mrb[0].mxu0
    %367 = vmatprep.mubr.f32.mxu0 0.0
    %368 = vmatmul.mubr.f32.gmra.mrb[0].mxu0 %v89
    %v369 = vpop.f32.mrb[0].mxu0
    %v370 = vadd.f32 0.0, %v369
    %v371 = vpop.f32.mrb[0].mxu0
    %372 = vmatprep.mubr.f32.mxu0 0.0
    %373 = vmatmul.mubr.f32.gmra.mrb[0].mxu0 %v92
    %v374 = vpop.f32.mrb[0].mxu0
    %v375 = vadd.f32 0.0, %v374
    %v376 = vpop.f32.mrb[0].mxu0
    %377 = vmatprep.mubr.f32.mxu0 0.0
    %378 = vmatmul.mubr.f32.gmra.mrb[0].mxu0 %v95
    %v379 = vpop.f32.mrb[0].mxu0
    %v380 = vadd.f32 0.0, %v379
    %v381 = vpop.f32.mrb[0].mxu0
    %382 = vmatprep.mubr.f32.mxu0 0.0
    %383 = vmatmul.mubr.f32.gmra.mrb[0].mxu0 %v98
    %v384 = vpop.f32.mrb[0].mxu0
    %v385 = vadd.f32 0.0, %v384
    %v386 = vpop.f32.mrb[0].mxu0
    %387 = vmatprep.mubr.f32.mxu0 0.0
    %388 = vmatmul.mubr.f32.gmra.mrb[0].mxu0 %v101
    %v389 = vpop.f32.mrb[0].mxu0
    %v390 = vadd.f32 0.0, %v389
    %v391 = vpop.f32.mrb[0].mxu0
    %392 = vmatprep.mubr.f32.mxu0 0.0
    %393 = vmatmul.mubr.f32.gmra.mrb[0].mxu0 %v104
    %v394 = vpop.f32.mrb[0].mxu0
    %v395 = vadd.f32 0.0, %v394
    %v396 = vpop.f32.mrb[0].mxu0
    %397 = vmatprep.mubr.f32.mxu0 0.0
    %398 = vmatmul.mubr.f32.gmra.mrb[0].mxu0 %v107
    %v399 = vpop.f32.mrb[0].mxu0
    %v400 = vadd.f32 0.0, %v399
    %v401 = vpop.f32.mrb[0].mxu0
    %402 = vmatprep.mubr.f32.mxu0 0.0
    %403 = vmatmul.mubr.f32.gmra.mrb[0].mxu0 %v110
    %v404 = vpop.f32.mrb[0].mxu0
    %v405 = vadd.f32 0.0, %v404
    %v406 = vpop.f32.mrb[0].mxu0
    %407 = vmatprep.mubr.f32.mxu0 0.0
    %408 = vmatmul.mubr.f32.gmra.mrb[0].mxu0 %v113
    %v409 = vpop.f32.mrb[0].mxu0
    %v410 = vadd.f32 0.0, %v409
    %v411 = vpop.f32.mrb[0].mxu0
    %412 = vdwg.mxu0
    %v413 = vld [vmem:[%s4] sm:$0x3f]
    %vm414 = vcmask 48128
    %v416 = vsel %vm414, %v49, 0
    %v419 = vsel %vm414, %v50, 0
    %v422 = vsel %vm414, %v51, 0
    %v425 = vsel %vm414, %v52, 0
    %v428 = vsel %vm414, %v53, 0
    %v431 = vsel %vm414, %v54, 0
    %v434 = vsel %vm414, %v55, 0
    %v437 = vsel %vm414, %v56, 0
    %v440 = vsel %vm414, %v57, 0
    %v443 = vsel %vm414, %v58, 0
    %v446 = vsel %vm414, %v59, 0
    %v449 = vsel %vm414, %v60, 0
    %v452 = vsel %vm414, %v61, 0
    %v455 = vsel %vm414, %v62, 0
    %v458 = vsel %vm414, %v63, 0
    %v461 = vsel %vm414, %v64, 0
    %vm463 = vcmask 1045504
    %v465 = vsel %vm463, %v413, 0
    %467 = vmatprep.subr.mxu0 0.0
    %468 = vmatpush1.msra.mxu0 %v465
    %469 = vmatprep.subr.mxu0 0.0
    %470 = vmatpush1.msra.mxu0 0.0
    %471 = vmatprep.subr.mxu0 0.0
    %472 = vmatpush1.msra.mxu0 0.0
    %473 = vmatprep.subr.mxu0 0.0
    %474 = vmatpush1.msra.mxu0 0.0
    %475 = vmatprep.subr.mxu0 0.0
    %476 = vmatpush1.msra.mxu0 0.0
    %477 = vmatprep.subr.mxu0 0.0
    %478 = vmatpush1.msra.mxu0 0.0
    %479 = vmatprep.subr.mxu0 0.0
    %480 = vmatpush1.msra.mxu0 0.0
    %481 = vmatprep.subr.mxu0 0.0
    %482 = vmatpush1.msra.mxu0 0.0
    %483 = vmatprep.subr.mxu0 0.0
    %484 = vmatpush1.msra.mxu0 0.0
    %485 = vmatprep.subr.mxu0 0.0
    %486 = vmatpush1.msra.mxu0 0.0
    %487 = vmatprep.subr.mxu0 0.0
    %488 = vmatpush1.msra.mxu0 0.0
    %489 = vmatprep.subr.mxu0 0.0
    %490 = vmatpush1.msra.mxu0 0.0
    %491 = vmatprep.subr.mxu0 0.0
    %492 = vmatpush1.msra.mxu0 0.0
    %493 = vmatprep.subr.mxu0 0.0
    %494 = vmatpush1.msra.mxu0 0.0
    %495 = vmatprep.subr.mxu0 0.0
    %496 = vmatpush1.msra.mxu0 0.0
    %497 = vmatprep.subr.mxu0 0.0
    %498 = vmatpush1.msra.mxu0 0.0
    %499 = vmatprep.subr.mxu0 0.0
    %500 = vmatpush1.msra.mxu0 0.0
    %501 = vmatprep.subr.mxu0 0.0
    %502 = vmatpush1.msra.mxu0 0.0
    %503 = vmatprep.subr.mxu0 0.0
    %504 = vmatpush1.msra.mxu0 0.0
    %505 = vmatprep.subr.mxu0 0.0
    %506 = vmatpush1.msra.mxu0 0.0
    %507 = vmatprep.subr.mxu0 0.0
    %508 = vmatpush1.msra.mxu0 0.0
    %509 = vmatprep.subr.mxu0 0.0
    %510 = vmatpush1.msra.mxu0 0.0
    %511 = vmatprep.subr.mxu0 0.0
    %512 = vmatpush1.msra.mxu0 0.0
    %513 = vmatprep.subr.mxu0 0.0
    %514 = vmatpush1.msra.mxu0 0.0
    %515 = vmatprep.subr.mxu0 0.0
    %516 = vmatpush1.msra.mxu0 0.0
    %517 = vmatprep.subr.mxu0 0.0
    %518 = vmatpush1.msra.mxu0 0.0
    %519 = vmatprep.subr.mxu0 0.0
    %520 = vmatpush1.msra.mxu0 0.0
    %521 = vmatprep.subr.mxu0 0.0
    %522 = vmatpush1.msra.mxu0 0.0
    %523 = vmatprep.subr.mxu0 0.0
    %524 = vmatpush1.msra.mxu0 0.0
    %525 = vmatprep.subr.mxu0 0.0
    %526 = vmatpush1.msra.mxu0 0.0
    %527 = vmatprep.subr.mxu0 0.0
    %528 = vmatpush1.msra.mxu0 0.0
    %529 = vmatprep.subr.mxu0 0.0
    %530 = vmatpush1.msra.mxu0 0.0
    %531 = vmatprep.mubr.f32.mxu0 0.0
    %532 = vmatmul.mubr.f32.gmra.mrb[0].mxu0 %v416
    %v533 = vpop.f32.mrb[0].mxu0
    %v534 = vadd.f32 0.0, %v533
    %v535 = vpop.f32.mrb[0].mxu0
    %536 = vmatprep.mubr.f32.mxu0 0.0
    %537 = vmatmul.mubr.f32.gmra.mrb[0].mxu0 %v419
    %v538 = vpop.f32.mrb[0].mxu0
    %v539 = vadd.f32 0.0, %v538
    %v540 = vpop.f32.mrb[0].mxu0
    %541 = vmatprep.mubr.f32.mxu0 0.0
    %542 = vmatmul.mubr.f32.gmra.mrb[0].mxu0 %v422
    %v543 = vpop.f32.mrb[0].mxu0
    %v544 = vadd.f32 0.0, %v543
    %v545 = vpop.f32.mrb[0].mxu0
    %546 = vmatprep.mubr.f32.mxu0 0.0
    %547 = vmatmul.mubr.f32.gmra.mrb[0].mxu0 %v425
    %v548 = vpop.f32.mrb[0].mxu0
    %v549 = vadd.f32 0.0, %v548
    %v550 = vpop.f32.mrb[0].mxu0
    %551 = vmatprep.mubr.f32.mxu0 0.0
    %552 = vmatmul.mubr.f32.gmra.mrb[0].mxu0 %v428
    %v553 = vpop.f32.mrb[0].mxu0
    %v554 = vadd.f32 0.0, %v553
    %v555 = vpop.f32.mrb[0].mxu0
    %556 = vmatprep.mubr.f32.mxu0 0.0
    %557 = vmatmul.mubr.f32.gmra.mrb[0].mxu0 %v431
    %v558 = vpop.f32.mrb[0].mxu0
    %v559 = vadd.f32 0.0, %v558
    %v560 = vpop.f32.mrb[0].mxu0
    %561 = vmatprep.mubr.f32.mxu0 0.0
    %562 = vmatmul.mubr.f32.gmra.mrb[0].mxu0 %v434
    %v563 = vpop.f32.mrb[0].mxu0
    %v564 = vadd.f32 0.0, %v563
    %v565 = vpop.f32.mrb[0].mxu0
    %566 = vmatprep.mubr.f32.mxu0 0.0
    %567 = vmatmul.mubr.f32.gmra.mrb[0].mxu0 %v437
    %v568 = vpop.f32.mrb[0].mxu0
    %v569 = vadd.f32 0.0, %v568
    %v570 = vpop.f32.mrb[0].mxu0
    %571 = vmatprep.mubr.f32.mxu0 0.0
    %572 = vmatmul.mubr.f32.gmra.mrb[0].mxu0 %v440
    %v573 = vpop.f32.mrb[0].mxu0
    %v574 = vadd.f32 0.0, %v573
    %v575 = vpop.f32.mrb[0].mxu0
    %576 = vmatprep.mubr.f32.mxu0 0.0
    %577 = vmatmul.mubr.f32.gmra.mrb[0].mxu0 %v443
    %v578 = vpop.f32.mrb[0].mxu0
    %v579 = vadd.f32 0.0, %v578
    %v580 = vpop.f32.mrb[0].mxu0
    %581 = vmatprep.mubr.f32.mxu0 0.0
    %582 = vmatmul.mubr.f32.gmra.mrb[0].mxu0 %v446
    %v583 = vpop.f32.mrb[0].mxu0
    %v584 = vadd.f32 0.0, %v583
    %v585 = vpop.f32.mrb[0].mxu0
    %586 = vmatprep.mubr.f32.mxu0 0.0
    %587 = vmatmul.mubr.f32.gmra.mrb[0].mxu0 %v449
    %v588 = vpop.f32.mrb[0].mxu0
    %v589 = vadd.f32 0.0, %v588
    %v590 = vpop.f32.mrb[0].mxu0
    %591 = vmatprep.mubr.f32.mxu0 0.0
    %592 = vmatmul.mubr.f32.gmra.mrb[0].mxu0 %v452
    %v593 = vpop.f32.mrb[0].mxu0
    %v594 = vadd.f32 0.0, %v593
    %v595 = vpop.f32.mrb[0].mxu0
    %596 = vmatprep.mubr.f32.mxu0 0.0
    %597 = vmatmul.mubr.f32.gmra.mrb[0].mxu0 %v455
    %v598 = vpop.f32.mrb[0].mxu0
    %v599 = vadd.f32 0.0, %v598
    %v600 = vpop.f32.mrb[0].mxu0
    %601 = vmatprep.mubr.f32.mxu0 0.0
    %602 = vmatmul.mubr.f32.gmra.mrb[0].mxu0 %v458
    %v603 = vpop.f32.mrb[0].mxu0
    %v604 = vadd.f32 0.0, %v603
    %v605 = vpop.f32.mrb[0].mxu0
    %606 = vmatprep.mubr.f32.mxu0 0.0
    %607 = vmatmul.mubr.f32.gmra.mrb[0].mxu0 %v461
    %v608 = vpop.f32.mrb[0].mxu0
    %v609 = vadd.f32 0.0, %v608
    %v610 = vpop.f32.mrb[0].mxu0
    %611 = vdwg.mxu0
    %v612 = vld [vmem:[%s5] sm:$0x3f]
    %v614 = vsel %vm463, %v612, 0
    %616 = vmatprep.subr.mxu0 0.0
    %617 = vmatpush1.msra.mxu0 %v614
    %618 = vmatprep.subr.mxu0 0.0
    %619 = vmatpush1.msra.mxu0 0.0
    %620 = vmatprep.subr.mxu0 0.0
    %621 = vmatpush1.msra.mxu0 0.0
    %622 = vmatprep.subr.mxu0 0.0
    %623 = vmatpush1.msra.mxu0 0.0
    %624 = vmatprep.subr.mxu0 0.0
    %625 = vmatpush1.msra.mxu0 0.0
    %626 = vmatprep.subr.mxu0 0.0
    %627 = vmatpush1.msra.mxu0 0.0
    %628 = vmatprep.subr.mxu0 0.0
    %629 = vmatpush1.msra.mxu0 0.0
    %630 = vmatprep.subr.mxu0 0.0
    %631 = vmatpush1.msra.mxu0 0.0
    %632 = vmatprep.subr.mxu0 0.0
    %633 = vmatpush1.msra.mxu0 0.0
    %634 = vmatprep.subr.mxu0 0.0
    %635 = vmatpush1.msra.mxu0 0.0
    %636 = vmatprep.subr.mxu0 0.0
    %637 = vmatpush1.msra.mxu0 0.0
    %638 = vmatprep.subr.mxu0 0.0
    %639 = vmatpush1.msra.mxu0 0.0
    %640 = vmatprep.subr.mxu0 0.0
    %641 = vmatpush1.msra.mxu0 0.0
    %642 = vmatprep.subr.mxu0 0.0
    %643 = vmatpush1.msra.mxu0 0.0
    %644 = vmatprep.subr.mxu0 0.0
    %645 = vmatpush1.msra.mxu0 0.0
    %646 = vmatprep.subr.mxu0 0.0
    %647 = vmatpush1.msra.mxu0 0.0
    %648 = vmatprep.subr.mxu0 0.0
    %649 = vmatpush1.msra.mxu0 0.0
    %650 = vmatprep.subr.mxu0 0.0
    %651 = vmatpush1.msra.mxu0 0.0
    %652 = vmatprep.subr.mxu0 0.0
    %653 = vmatpush1.msra.mxu0 0.0
    %654 = vmatprep.subr.mxu0 0.0
    %655 = vmatpush1.msra.mxu0 0.0
    %656 = vmatprep.subr.mxu0 0.0
    %657 = vmatpush1.msra.mxu0 0.0
    %658 = vmatprep.subr.mxu0 0.0
    %659 = vmatpush1.msra.mxu0 0.0
    %660 = vmatprep.subr.mxu0 0.0
    %661 = vmatpush1.msra.mxu0 0.0
    %662 = vmatprep.subr.mxu0 0.0
    %663 = vmatpush1.msra.mxu0 0.0
    %664 = vmatprep.subr.mxu0 0.0
    %665 = vmatpush1.msra.mxu0 0.0
    %666 = vmatprep.subr.mxu0 0.0
    %667 = vmatpush1.msra.mxu0 0.0
    %668 = vmatprep.subr.mxu0 0.0
    %669 = vmatpush1.msra.mxu0 0.0
    %670 = vmatprep.subr.mxu0 0.0
    %671 = vmatpush1.msra.mxu0 0.0
    %672 = vmatprep.subr.mxu0 0.0
    %673 = vmatpush1.msra.mxu0 0.0
    %674 = vmatprep.subr.mxu0 0.0
    %675 = vmatpush1.msra.mxu0 0.0
    %676 = vmatprep.subr.mxu0 0.0
    %677 = vmatpush1.msra.mxu0 0.0
    %678 = vmatprep.subr.mxu0 0.0
    %679 = vmatpush1.msra.mxu0 0.0
    %680 = vmatprep.mubr.f32.mxu0 0.0
    %681 = vmatmul.mubr.f32.gmra.mrb[0].mxu0 %v416
    %v682 = vpop.f32.mrb[0].mxu0
    %v683 = vadd.f32 0.0, %v682
    %v684 = vpop.f32.mrb[0].mxu0
    %685 = vmatprep.mubr.f32.mxu0 0.0
    %686 = vmatmul.mubr.f32.gmra.mrb[0].mxu0 %v419
    %v687 = vpop.f32.mrb[0].mxu0
    %v688 = vadd.f32 0.0, %v687
    %v689 = vpop.f32.mrb[0].mxu0
    %690 = vmatprep.mubr.f32.mxu0 0.0
    %691 = vmatmul.mubr.f32.gmra.mrb[0].mxu0 %v422
    %v692 = vpop.f32.mrb[0].mxu0
    %v693 = vadd.f32 0.0, %v692
    %v694 = vpop.f32.mrb[0].mxu0
    %695 = vmatprep.mubr.f32.mxu0 0.0
    %696 = vmatmul.mubr.f32.gmra.mrb[0].mxu0 %v425
    %v697 = vpop.f32.mrb[0].mxu0
    %v698 = vadd.f32 0.0, %v697
    %v699 = vpop.f32.mrb[0].mxu0
    %700 = vmatprep.mubr.f32.mxu0 0.0
    %701 = vmatmul.mubr.f32.gmra.mrb[0].mxu0 %v428
    %v702 = vpop.f32.mrb[0].mxu0
    %v703 = vadd.f32 0.0, %v702
    %v704 = vpop.f32.mrb[0].mxu0
    %705 = vmatprep.mubr.f32.mxu0 0.0
    %706 = vmatmul.mubr.f32.gmra.mrb[0].mxu0 %v431
    %v707 = vpop.f32.mrb[0].mxu0
    %v708 = vadd.f32 0.0, %v707
    %v709 = vpop.f32.mrb[0].mxu0
    %710 = vmatprep.mubr.f32.mxu0 0.0
    %711 = vmatmul.mubr.f32.gmra.mrb[0].mxu0 %v434
    %v712 = vpop.f32.mrb[0].mxu0
    %v713 = vadd.f32 0.0, %v712
    %v714 = vpop.f32.mrb[0].mxu0
    %715 = vmatprep.mubr.f32.mxu0 0.0
    %716 = vmatmul.mubr.f32.gmra.mrb[0].mxu0 %v437
    %v717 = vpop.f32.mrb[0].mxu0
    %v718 = vadd.f32 0.0, %v717
    %v719 = vpop.f32.mrb[0].mxu0
    %720 = vmatprep.mubr.f32.mxu0 0.0
    %721 = vmatmul.mubr.f32.gmra.mrb[0].mxu0 %v440
    %v722 = vpop.f32.mrb[0].mxu0
    %v723 = vadd.f32 0.0, %v722
    %v724 = vpop.f32.mrb[0].mxu0
    %725 = vmatprep.mubr.f32.mxu0 0.0
    %726 = vmatmul.mubr.f32.gmra.mrb[0].mxu0 %v443
    %v727 = vpop.f32.mrb[0].mxu0
    %v728 = vadd.f32 0.0, %v727
    %v729 = vpop.f32.mrb[0].mxu0
    %730 = vmatprep.mubr.f32.mxu0 0.0
    %731 = vmatmul.mubr.f32.gmra.mrb[0].mxu0 %v446
    %v732 = vpop.f32.mrb[0].mxu0
    %v733 = vadd.f32 0.0, %v732
    %v734 = vpop.f32.mrb[0].mxu0
    %735 = vmatprep.mubr.f32.mxu0 0.0
    %736 = vmatmul.mubr.f32.gmra.mrb[0].mxu0 %v449
    %v737 = vpop.f32.mrb[0].mxu0
    %v738 = vadd.f32 0.0, %v737
    %v739 = vpop.f32.mrb[0].mxu0
    %740 = vmatprep.mubr.f32.mxu0 0.0
    %741 = vmatmul.mubr.f32.gmra.mrb[0].mxu0 %v452
    %v742 = vpop.f32.mrb[0].mxu0
    %v743 = vadd.f32 0.0, %v742
    %v744 = vpop.f32.mrb[0].mxu0
    %745 = vmatprep.mubr.f32.mxu0 0.0
    %746 = vmatmul.mubr.f32.gmra.mrb[0].mxu0 %v455
    %v747 = vpop.f32.mrb[0].mxu0
    %v748 = vadd.f32 0.0, %v747
    %v749 = vpop.f32.mrb[0].mxu0
    %750 = vmatprep.mubr.f32.mxu0 0.0
    %751 = vmatmul.mubr.f32.gmra.mrb[0].mxu0 %v458
    %v752 = vpop.f32.mrb[0].mxu0
    %v753 = vadd.f32 0.0, %v752
    %v754 = vpop.f32.mrb[0].mxu0
    %755 = vmatprep.mubr.f32.mxu0 0.0
    %756 = vmatmul.mubr.f32.gmra.mrb[0].mxu0 %v461
    %v757 = vpop.f32.mrb[0].mxu0
    %v758 = vadd.f32 0.0, %v757
    %v759 = vpop.f32.mrb[0].mxu0
    %760 = vdwg.mxu0
    %v761 = vmul.f32 %v186, %v534
    %v762 = vmul.f32 %v191, %v539
    %v763 = vmul.f32 %v196, %v544
    %v764 = vmul.f32 %v201, %v549
    %v765 = vmul.f32 %v206, %v554
    %v766 = vmul.f32 %v211, %v559
    %v767 = vmul.f32 %v216, %v564
    %v768 = vmul.f32 %v221, %v569
    %v769 = vmul.f32 %v226, %v574
    %v770 = vmul.f32 %v231, %v579
    %v771 = vmul.f32 %v236, %v584
    %v772 = vmul.f32 %v241, %v589
    %v773 = vmul.f32 %v246, %v594
    %v774 = vmul.f32 %v251, %v599
    %v775 = vmul.f32 %v256, %v604
    %v776 = vmul.f32 %v261, %v609
    %v777 = vmul.f32 %v335, %v683
    %v778 = vmul.f32 %v340, %v688
    %v779 = vmul.f32 %v345, %v693
    %v780 = vmul.f32 %v350, %v698
    %v781 = vmul.f32 %v355, %v703
    %v782 = vmul.f32 %v360, %v708
    %v783 = vmul.f32 %v365, %v713
    %v784 = vmul.f32 %v370, %v718
    %v785 = vmul.f32 %v375, %v723
    %v786 = vmul.f32 %v380, %v728
    %v787 = vmul.f32 %v385, %v733
    %v788 = vmul.f32 %v390, %v738
    %v789 = vmul.f32 %v395, %v743
    %v790 = vmul.f32 %v400, %v748
    %v791 = vmul.f32 %v405, %v753
    %v792 = vmul.f32 %v410, %v758
    %v793 = vsub.f32 %v761, %v777
    %v794 = vsub.f32 %v762, %v778
    %v795 = vsub.f32 %v763, %v779
    %v796 = vsub.f32 %v764, %v780
    %v797 = vsub.f32 %v765, %v781
    %v798 = vsub.f32 %v766, %v782
    %v799 = vsub.f32 %v767, %v783
    %v800 = vsub.f32 %v768, %v784
    %v801 = vsub.f32 %v769, %v785
    %v802 = vsub.f32 %v770, %v786
    %v803 = vsub.f32 %v771, %v787
    %v804 = vsub.f32 %v772, %v788
    %v805 = vsub.f32 %v773, %v789
    %v806 = vsub.f32 %v774, %v790
    %v807 = vsub.f32 %v775, %v791
    %v808 = vsub.f32 %v776, %v792
    %v809 = vmul.f32 %v534, %v335
    %v810 = vmul.f32 %v539, %v340
    %v811 = vmul.f32 %v544, %v345
    %v812 = vmul.f32 %v549, %v350
    %v813 = vmul.f32 %v554, %v355
    %v814 = vmul.f32 %v559, %v360
    %v815 = vmul.f32 %v564, %v365
    %v816 = vmul.f32 %v569, %v370
    %v817 = vmul.f32 %v574, %v375
    %v818 = vmul.f32 %v579, %v380
    %v819 = vmul.f32 %v584, %v385
    %v820 = vmul.f32 %v589, %v390
    %v821 = vmul.f32 %v594, %v395
    %v822 = vmul.f32 %v599, %v400
    %v823 = vmul.f32 %v604, %v405
    %v824 = vmul.f32 %v609, %v410
    %v825 = vmul.f32 %v186, %v683
    %v826 = vmul.f32 %v191, %v688
    %v827 = vmul.f32 %v196, %v693
    %v828 = vmul.f32 %v201, %v698
    %v829 = vmul.f32 %v206, %v703
    %v830 = vmul.f32 %v211, %v708
    %v831 = vmul.f32 %v216, %v713
    %v832 = vmul.f32 %v221, %v718
    %v833 = vmul.f32 %v226, %v723
    %v834 = vmul.f32 %v231, %v728
    %v835 = vmul.f32 %v236, %v733
    %v836 = vmul.f32 %v241, %v738
    %v837 = vmul.f32 %v246, %v743
    %v838 = vmul.f32 %v251, %v748
    %v839 = vmul.f32 %v256, %v753
    %v840 = vmul.f32 %v261, %v758
    %v841 = vadd.f32 %v809, %v825
    %v842 = vadd.f32 %v810, %v826
    %v843 = vadd.f32 %v811, %v827
    %v844 = vadd.f32 %v812, %v828
    %v845 = vadd.f32 %v813, %v829
    %v846 = vadd.f32 %v814, %v830
    %v847 = vadd.f32 %v815, %v831
    %v848 = vadd.f32 %v816, %v832
    %v849 = vadd.f32 %v817, %v833
    %v850 = vadd.f32 %v818, %v834
    %v851 = vadd.f32 %v819, %v835
    %v852 = vadd.f32 %v820, %v836
    %v853 = vadd.f32 %v821, %v837
    %v854 = vadd.f32 %v822, %v838
    %v855 = vadd.f32 %v823, %v839
    %v856 = vadd.f32 %v824, %v840
    %v857 = vld [vmem:[%s6] sm:$0x3]
    %858 = vmatprep.subr.mxu0 0.0
    %859 = vmatpush1.msra.mxu0 %v793
    %860 = vmatprep.subr.mxu0 0.0
    %861 = vmatpush1.msra.mxu0 %v794
    %862 = vmatprep.subr.mxu0 0.0
    %863 = vmatpush1.msra.mxu0 %v795
    %864 = vmatprep.subr.mxu0 0.0
    %865 = vmatpush1.msra.mxu0 %v796
    %866 = vmatprep.subr.mxu0 0.0
    %867 = vmatpush1.msra.mxu0 %v797
    %868 = vmatprep.subr.mxu0 0.0
    %869 = vmatpush1.msra.mxu0 %v798
    %870 = vmatprep.subr.mxu0 0.0
    %871 = vmatpush1.msra.mxu0 %v799
    %872 = vmatprep.subr.mxu0 0.0
    %873 = vmatpush1.msra.mxu0 %v800
    %874 = vmatprep.subr.mxu0 0.0
    %875 = vmatpush1.msra.mxu0 %v801
    %876 = vmatprep.subr.mxu0 0.0
    %877 = vmatpush1.msra.mxu0 %v802
    %878 = vmatprep.subr.mxu0 0.0
    %879 = vmatpush1.msra.mxu0 %v803
    %880 = vmatprep.subr.mxu0 0.0
    %881 = vmatpush1.msra.mxu0 %v804
    %882 = vmatprep.subr.mxu0 0.0
    %883 = vmatpush1.msra.mxu0 %v805
    %884 = vmatprep.subr.mxu0 0.0
    %885 = vmatpush1.msra.mxu0 %v806
    %886 = vmatprep.subr.mxu0 0.0
    %887 = vmatpush1.msra.mxu0 %v807
    %888 = vmatprep.subr.mxu0 0.0
    %889 = vmatpush1.msra.mxu0 %v808
    %890 = vmatprep.subr.mxu0 0.0
    %891 = vmatpush1.msra.mxu0 0.0
    %892 = vmatprep.subr.mxu0 0.0
    %893 = vmatpush1.msra.mxu0 0.0
    %894 = vmatprep.subr.mxu0 0.0
    %895 = vmatpush1.msra.mxu0 0.0
    %896 = vmatprep.subr.mxu0 0.0
    %897 = vmatpush1.msra.mxu0 0.0
    %898 = vmatprep.subr.mxu0 0.0
    %899 = vmatpush1.msra.mxu0 0.0
    %900 = vmatprep.subr.mxu0 0.0
    %901 = vmatpush1.msra.mxu0 0.0
    %902 = vmatprep.subr.mxu0 0.0
    %903 = vmatpush1.msra.mxu0 0.0
    %904 = vmatprep.subr.mxu0 0.0
    %905 = vmatpush1.msra.mxu0 0.0
    %906 = vmatprep.subr.mxu0 0.0
    %907 = vmatpush1.msra.mxu0 0.0
    %908 = vmatprep.subr.mxu0 0.0
    %909 = vmatpush1.msra.mxu0 0.0
    %910 = vmatprep.subr.mxu0 0.0
    %911 = vmatpush1.msra.mxu0 0.0
    %912 = vmatprep.subr.mxu0 0.0
    %913 = vmatpush1.msra.mxu0 0.0
    %914 = vmatprep.subr.mxu0 0.0
    %915 = vmatpush1.msra.mxu0 0.0
    %916 = vmatprep.subr.mxu0 0.0
    %917 = vmatpush1.msra.mxu0 0.0
    %918 = vmatprep.subr.mxu0 0.0
    %919 = vmatpush1.msra.mxu0 0.0
    %920 = vmatprep.subr.mxu0 0.0
    %921 = vmatpush1.msra.mxu0 0.0
    %922 = vmatprep.mubr.f32.mxu0 0.0
    %923 = vmatmul.mubr.f32.gmra.mrb[0].mxu0 %v857
    %v924 = vpop.f32.mrb[0].mxu0
    %v925 = vadd.f32 0.0, %v924
    %v926 = vpop.f32.mrb[0].mxu0
    %927 = vdwg.mxu0
    %928 = vmatprep.subr.mxu0 0.0
    %929 = vmatpush1.msra.mxu0 %v841
    %930 = vmatprep.subr.mxu0 0.0
    %931 = vmatpush1.msra.mxu0 %v842
    %932 = vmatprep.subr.mxu0 0.0
    %933 = vmatpush1.msra.mxu0 %v843
    %934 = vmatprep.subr.mxu0 0.0
    %935 = vmatpush1.msra.mxu0 %v844
    %936 = vmatprep.subr.mxu0 0.0
    %937 = vmatpush1.msra.mxu0 %v845
    %938 = vmatprep.subr.mxu0 0.0
    %939 = vmatpush1.msra.mxu0 %v846
    %940 = vmatprep.subr.mxu0 0.0
    %941 = vmatpush1.msra.mxu0 %v847
    %942 = vmatprep.subr.mxu0 0.0
    %943 = vmatpush1.msra.mxu0 %v848
    %944 = vmatprep.subr.mxu0 0.0
    %945 = vmatpush1.msra.mxu0 %v849
    %946 = vmatprep.subr.mxu0 0.0
    %947 = vmatpush1.msra.mxu0 %v850
    %948 = vmatprep.subr.mxu0 0.0
    %949 = vmatpush1.msra.mxu0 %v851
    %950 = vmatprep.subr.mxu0 0.0
    %951 = vmatpush1.msra.mxu0 %v852
    %952 = vmatprep.subr.mxu0 0.0
    %953 = vmatpush1.msra.mxu0 %v853
    %954 = vmatprep.subr.mxu0 0.0
    %955 = vmatpush1.msra.mxu0 %v854
    %956 = vmatprep.subr.mxu0 0.0
    %957 = vmatpush1.msra.mxu0 %v855
    %958 = vmatprep.subr.mxu0 0.0
    %959 = vmatpush1.msra.mxu0 %v856
    %960 = vmatprep.subr.mxu0 0.0
    %961 = vmatpush1.msra.mxu0 0.0
    %962 = vmatprep.subr.mxu0 0.0
    %963 = vmatpush1.msra.mxu0 0.0
    %964 = vmatprep.subr.mxu0 0.0
    %965 = vmatpush1.msra.mxu0 0.0
    %966 = vmatprep.subr.mxu0 0.0
    %967 = vmatpush1.msra.mxu0 0.0
    %968 = vmatprep.subr.mxu0 0.0
    %969 = vmatpush1.msra.mxu0 0.0
    %970 = vmatprep.subr.mxu0 0.0
    %971 = vmatpush1.msra.mxu0 0.0
    %972 = vmatprep.subr.mxu0 0.0
    %973 = vmatpush1.msra.mxu0 0.0
    %974 = vmatprep.subr.mxu0 0.0
    %975 = vmatpush1.msra.mxu0 0.0
    %976 = vmatprep.subr.mxu0 0.0
    %977 = vmatpush1.msra.mxu0 0.0
    %978 = vmatprep.subr.mxu0 0.0
    %979 = vmatpush1.msra.mxu0 0.0
    %980 = vmatprep.subr.mxu0 0.0
    %981 = vmatpush1.msra.mxu0 0.0
    %982 = vmatprep.subr.mxu0 0.0
    %983 = vmatpush1.msra.mxu0 0.0
    %984 = vmatprep.subr.mxu0 0.0
    %985 = vmatpush1.msra.mxu0 0.0
    %986 = vmatprep.subr.mxu0 0.0
    %987 = vmatpush1.msra.mxu0 0.0
    %988 = vmatprep.subr.mxu0 0.0
    %989 = vmatpush1.msra.mxu0 0.0
    %990 = vmatprep.subr.mxu0 0.0
    %991 = vmatpush1.msra.mxu0 0.0
    %992 = vmatprep.mubr.f32.mxu0 0.0
    %993 = vmatmul.mubr.f32.gmra.mrb[0].mxu0 %v857
    %v994 = vpop.f32.mrb[0].mxu0
    %v995 = vadd.f32 0.0, %v994
    %v996 = vpop.f32.mrb[0].mxu0
    %997 = vdwg.mxu0
    %v998 = vld [vmem:[%s7] sm:$0xff]
    %v999 = vld [vmem:[%s7 + $0x8] sm:$0xff]
    %v1000 = vld [vmem:[%s7 + $0x10] sm:$0xff]
    %v1001 = vld [vmem:[%s7 + $0x18] sm:$0xff]
    %v1002 = vld [vmem:[%s8] sm:$0xff]
    %v1003 = vld [vmem:[%s8 + $0x8] sm:$0xff]
    %v1004 = vld [vmem:[%s8 + $0x10] sm:$0xff]
    %v1005 = vld [vmem:[%s8 + $0x18] sm:$0xff]
    %vm1006 = vcmask 261120
    %v1008 = vsel %vm1006, %v995, 0
    %1010 = vmatprep.subr.mxu0 0.0
    %1011 = vmatpush1.msra.mxu0 %v1002
    %1012 = vmatprep.subr.mxu0 0.0
    %1013 = vmatpush1.msra.mxu0 %v1003
    %1014 = vmatprep.subr.mxu0 0.0
    %1015 = vmatpush1.msra.mxu0 %v1004
    %1016 = vmatprep.subr.mxu0 0.0
    %1017 = vmatpush1.msra.mxu0 %v1005
    %1018 = vmatprep.subr.mxu0 0.0
    %1019 = vmatpush1.msra.mxu0 0.0
    %1020 = vmatprep.subr.mxu0 0.0
    %1021 = vmatpush1.msra.mxu0 0.0
    %1022 = vmatprep.subr.mxu0 0.0
    %1023 = vmatpush1.msra.mxu0 0.0
    %1024 = vmatprep.subr.mxu0 0.0
    %1025 = vmatpush1.msra.mxu0 0.0
    %1026 = vmatprep.subr.mxu0 0.0
    %1027 = vmatpush1.msra.mxu0 0.0
    %1028 = vmatprep.subr.mxu0 0.0
    %1029 = vmatpush1.msra.mxu0 0.0
    %1030 = vmatprep.subr.mxu0 0.0
    %1031 = vmatpush1.msra.mxu0 0.0
    %1032 = vmatprep.subr.mxu0 0.0
    %1033 = vmatpush1.msra.mxu0 0.0
    %1034 = vmatprep.subr.mxu0 0.0
    %1035 = vmatpush1.msra.mxu0 0.0
    %1036 = vmatprep.subr.mxu0 0.0
    %1037 = vmatpush1.msra.mxu0 0.0
    %1038 = vmatprep.subr.mxu0 0.0
    %1039 = vmatpush1.msra.mxu0 0.0
    %1040 = vmatprep.subr.mxu0 0.0
    %1041 = vmatpush1.msra.mxu0 0.0
    %1042 = vmatprep.subr.mxu0 0.0
    %1043 = vmatpush1.msra.mxu0 0.0
    %1044 = vmatprep.subr.mxu0 0.0
    %1045 = vmatpush1.msra.mxu0 0.0
    %1046 = vmatprep.subr.mxu0 0.0
    %1047 = vmatpush1.msra.mxu0 0.0
    %1048 = vmatprep.subr.mxu0 0.0
    %1049 = vmatpush1.msra.mxu0 0.0
    %1050 = vmatprep.subr.mxu0 0.0
    %1051 = vmatpush1.msra.mxu0 0.0
    %1052 = vmatprep.subr.mxu0 0.0
    %1053 = vmatpush1.msra.mxu0 0.0
    %1054 = vmatprep.subr.mxu0 0.0
    %1055 = vmatpush1.msra.mxu0 0.0
    %1056 = vmatprep.subr.mxu0 0.0
    %1057 = vmatpush1.msra.mxu0 0.0
    %1058 = vmatprep.subr.mxu0 0.0
    %1059 = vmatpush1.msra.mxu0 0.0
    %1060 = vmatprep.subr.mxu0 0.0
    %1061 = vmatpush1.msra.mxu0 0.0
    %1062 = vmatprep.subr.mxu0 0.0
    %1063 = vmatpush1.msra.mxu0 0.0
    %1064 = vmatprep.subr.mxu0 0.0
    %1065 = vmatpush1.msra.mxu0 0.0
    %1066 = vmatprep.subr.mxu0 0.0
    %1067 = vmatpush1.msra.mxu0 0.0
    %1068 = vmatprep.subr.mxu0 0.0
    %1069 = vmatpush1.msra.mxu0 0.0
    %1070 = vmatprep.subr.mxu0 0.0
    %1071 = vmatpush1.msra.mxu0 0.0
    %1072 = vmatprep.subr.mxu0 0.0
    %1073 = vmatpush1.msra.mxu0 0.0
    %1074 = vmatprep.mubr.f32.mxu0 0.0
    %1075 = vmatmul.mubr.f32.gmra.mrb[0].mxu0 %v1008
    %v1076 = vpop.f32.mrb[0].mxu0
    %v1077 = vadd.f32 0.0, %v1076
    %v1078 = vpop.f32.mrb[0].mxu0
    %1079 = vdwg.mxu0
    %v1081 = vsel %vm1006, %v925, 0
    %1083 = vmatprep.subr.mxu0 0.0
    %1084 = vmatpush1.msra.mxu0 %v998
    %1085 = vmatprep.subr.mxu0 0.0
    %1086 = vmatpush1.msra.mxu0 %v999
    %1087 = vmatprep.subr.mxu0 0.0
    %1088 = vmatpush1.msra.mxu0 %v1000
    %1089 = vmatprep.subr.mxu0 0.0
    %1090 = vmatpush1.msra.mxu0 %v1001
    %1091 = vmatprep.subr.mxu0 0.0
    %1092 = vmatpush1.msra.mxu0 0.0
    %1093 = vmatprep.subr.mxu0 0.0
    %1094 = vmatpush1.msra.mxu0 0.0
    %1095 = vmatprep.subr.mxu0 0.0
    %1096 = vmatpush1.msra.mxu0 0.0
    %1097 = vmatprep.subr.mxu0 0.0
    %1098 = vmatpush1.msra.mxu0 0.0
    %1099 = vmatprep.subr.mxu0 0.0
    %1100 = vmatpush1.msra.mxu0 0.0
    %1101 = vmatprep.subr.mxu0 0.0
    %1102 = vmatpush1.msra.mxu0 0.0
    %1103 = vmatprep.subr.mxu0 0.0
    %1104 = vmatpush1.msra.mxu0 0.0
    %1105 = vmatprep.subr.mxu0 0.0
    %1106 = vmatpush1.msra.mxu0 0.0
    %1107 = vmatprep.subr.mxu0 0.0
    %1108 = vmatpush1.msra.mxu0 0.0
    %1109 = vmatprep.subr.mxu0 0.0
    %1110 = vmatpush1.msra.mxu0 0.0
    %1111 = vmatprep.subr.mxu0 0.0
    %1112 = vmatpush1.msra.mxu0 0.0
    %1113 = vmatprep.subr.mxu0 0.0
    %1114 = vmatpush1.msra.mxu0 0.0
    %1115 = vmatprep.subr.mxu0 0.0
    %1116 = vmatpush1.msra.mxu0 0.0
    %1117 = vmatprep.subr.mxu0 0.0
    %1118 = vmatpush1.msra.mxu0 0.0
    %1119 = vmatprep.subr.mxu0 0.0
    %1120 = vmatpush1.msra.mxu0 0.0
    %1121 = vmatprep.subr.mxu0 0.0
    %1122 = vmatpush1.msra.mxu0 0.0
    %1123 = vmatprep.subr.mxu0 0.0
    %1124 = vmatpush1.msra.mxu0 0.0
    %1125 = vmatprep.subr.mxu0 0.0
    %1126 = vmatpush1.msra.mxu0 0.0
    %1127 = vmatprep.subr.mxu0 0.0
    %1128 = vmatpush1.msra.mxu0 0.0
    %1129 = vmatprep.subr.mxu0 0.0
    %1130 = vmatpush1.msra.mxu0 0.0
    %1131 = vmatprep.subr.mxu0 0.0
    %1132 = vmatpush1.msra.mxu0 0.0
    %1133 = vmatprep.subr.mxu0 0.0
    %1134 = vmatpush1.msra.mxu0 0.0
    %1135 = vmatprep.subr.mxu0 0.0
    %1136 = vmatpush1.msra.mxu0 0.0
    %1137 = vmatprep.subr.mxu0 0.0
    %1138 = vmatpush1.msra.mxu0 0.0
    %1139 = vmatprep.subr.mxu0 0.0
    %1140 = vmatpush1.msra.mxu0 0.0
    %1141 = vmatprep.subr.mxu0 0.0
    %1142 = vmatpush1.msra.mxu0 0.0
    %1143 = vmatprep.subr.mxu0 0.0
    %1144 = vmatpush1.msra.mxu0 0.0
    %1145 = vmatprep.subr.mxu0 0.0
    %1146 = vmatpush1.msra.mxu0 0.0
    %1147 = vmatprep.mubr.f32.mxu0 0.0
    %1148 = vmatmul.mubr.f32.gmra.mrb[0].mxu0 %v1081
    %v1149 = vpop.f32.mrb[0].mxu0
    %v1150 = vadd.f32 %v1077, %v1149
    %v1151 = vpop.f32.mrb[0].mxu0
    %1152 = vdwg.mxu0
    %vm1153 = vcmask 254976
    %1154 = vst.msk [vmem:[#allocation2] sm:$0x3] %vm1153, %v1150
    // Predicated region
    $region38: #{tpu_custom_call.1} parent=1 // pred_check
      _
    $region39: #{tpu_custom_call.1} parent=1 // pred_check_branch
      %1156 = sbr.rel (0) target = $region41
    $region40: #{tpu_custom_call.1} parent=1 // pred_region
      %s1158 = ssub.s32 32, 32
      %1159 = vsyncadd [#allocation3], %s1158
      %s1161 = sshll.u32 [#allocation2], 4
      %s1162 = int_to_ptr.vmem [resolvable:$true] %s1161
      %1164 = dma.vmem_to_hbm [thread:$0]  %s1162, 32, %s9, [#allocation3]
    $region41: #{tpu_custom_call.1} parent=1 // pred_fallthru
      _
    // Predicated region
    $region42: #{tpu_custom_call.1} parent=1 // pred_check
      _
    $region43: #{tpu_custom_call.1} parent=1 // pred_check_branch
      %1166 = sbr.rel (0) target = $region45
    $region44: #{tpu_custom_call.1} parent=1 // pred_region
      %1167 = dma.done [#allocation3], 32
    $region45: #{tpu_custom_call.1} parent=1 // pred_fallthru
      _
    %1168 = vsyncpa [#allocation3], 1

</llo_original>
